<compile_context>
chip_gen: v6e
topology: v6e:2x2x1
jax: 0.10.0
libtpu: 0.0.40
codegen_flags: <defaults>
</compile_context>

<pallas_src>
import math

import jax
import jax.numpy as jnp
from jax import lax
from jax.experimental import pallas as pl
from jax.experimental.pallas import tpu as pltpu

FEAT_DIM = 368          # regnety_002 head.fc.in_features
TRACK_HID = 64
CLS_HID = 256


def _clip_rowsum_kernel(x_ref, out_ref, acc_ref):
    """Grid = (B, n_hw).  x_ref: (rows, hw_tile) raw uint8 pixels of one clip.

    Hot loop: cast each 128-lane chunk to f32 and add into a (rows, 128) f32
    accumulator (pure VPU).  The single XLU lane-reduce and the narrow store
    run once per clip in the finalize step.
    """
    h = pl.program_id(1)

    @pl.when(h == 0)
    def _init():
        acc_ref[...] = jnp.zeros_like(acc_ref)

    n_chunks = x_ref.shape[-1] // 128

    def body(g, carry):
        start = pl.multiple_of(g * 128, 128)
        return carry + x_ref[:, pl.ds(start, 128)].astype(jnp.float32)

    acc_ref[...] = lax.fori_loop(0, n_chunks, body, acc_ref[...],
                                 unroll=min(8, n_chunks))

    @pl.when(h == pl.num_programs(1) - 1)
    def _finalize():
        out_ref[...] = jnp.sum(acc_ref[...], axis=-1, keepdims=True)   # (rows, 1)


def _pick_hw_tile(hw_len, rows, budget_bytes):
    """Largest multiple-of-128 divisor of hw_len with rows*tile <= budget_bytes."""
    assert hw_len % 128 == 0
    max_lanes = max(128, (budget_bytes // rows) // 128 * 128)
    if hw_len <= max_lanes:
        return hw_len
    tile = max_lanes
    while tile >= 128:
        if hw_len % tile == 0:
            return tile
        tile -= 128
    return 128


def clip_pixel_rowsums(x, *, hw_tile_budget_bytes=4 << 20):
    """Per-(frame, channel) sum of raw pixel values, computed in Pallas.

    x: (B, T, C, H, W) uint8.  Returns (B, T, C) float32 raw-pixel sums over HW.
    """
    B, T, C, H, W = x.shape
    HW = H * W
    TC = T * C

    # Densify sublane packing: split each (t, c) pixel row into K sub-rows so the
    # uint8 row count is a multiple of the (32, 128) int8 tile height.
    K = 32 // math.gcd(TC, 32)
    rows = TC * K
    lane_unit = 128 * K
    HW_pad = -(-HW // lane_unit) * lane_unit

    x_flat = x.reshape(B, TC, HW)                      # free: contiguous reshape
    if HW_pad != HW:
        # Zero pixels add 0 to the raw sums; the 1/HW fold uses the true HW.
        x_flat = jnp.pad(x_flat, ((0, 0), (0, 0), (0, HW_pad - HW)))
    hw_len = HW_pad // K
    x_rows = x_flat.reshape(B, rows, hw_len)           # free: contiguous reshape

    hw_tile = _pick_hw_tile(hw_len, rows, hw_tile_budget_bytes)
    n_hw = hw_len // hw_tile
    assert hw_tile % 128 == 0 and rows * hw_tile <= hw_tile_budget_bytes

    grid_spec = pltpu.PrefetchScalarGridSpec(
        num_scalar_prefetch=0,
        grid=(B, n_hw),
        in_specs=[pl.BlockSpec((None, rows, hw_tile), lambda b, h: (b, 0, h))],
        out_specs=pl.BlockSpec((None, rows, 1), lambda b, h: (b, 0, 0)),
        scratch_shapes=[pltpu.VMEM((rows, 128), jnp.float32)],
    )

    rowsums = pl.pallas_call(
        _clip_rowsum_kernel,
        out_shape=jax.ShapeDtypeStruct((B, rows, 1), jnp.float32),
        grid_spec=grid_spec,
        compiler_params=pltpu.CompilerParams(
            dimension_semantics=("parallel", "arbitrary"),
            vmem_limit_bytes=32 * 1024 * 1024),
    )(x_rows)

    # Fold the K sub-rows back to per-(frame, channel) totals (tiny XLA op).
    return rowsums[..., 0].reshape(B, T, C, K).sum(axis=-1)


def tracking_forward(x, tracking, params, *, hw_tile_budget_bytes=4 << 20):
    """x: (B, T, C, H, W) raw pixels (uint8 preferred); tracking: (B, T, 4)."""
    B, T, C, H, W = x.shape
    HW = H * W
    tracking = tracking.astype(jnp.float32)

    # ---- Pallas hot path: HBM-bandwidth-bound raw-pixel sums ----
    raw_sum = clip_pixel_rowsums(x, hw_tile_budget_bytes=hw_tile_budget_bytes)

    # ---- Epilogue in plain XLA (hoisted out of the kernel) ----
    gap = raw_sum / (255.0 * HW)                                   # mean of x/255 over HW
    mean = params["mean"].reshape(1, 1, C)
    std = params["std"].reshape(1, 1, C)
    gap = (gap - mean) / std                                       # ImageNet normalize
    feat = gap @ params["wf"] + params["bf"]                       # (B, T, 368) backbone stand-in

    h = jnp.maximum(tracking @ params["wt1"] + params["bt1"], 0.0)
    track_feat = h @ params["wt2"] + params["bt2"]                 # (B, T, 64)

    combined = jnp.concatenate([feat, track_feat], axis=-1)        # (B, T, 432)
    pooled = jnp.max(combined, axis=1)                             # (B, 432)

    hc = jnp.maximum(pooled @ params["wc1"] + params["bc1"], 0.0)  # Dropout = identity
    return hc @ params["wc2"] + params["bc2"]


def make_params(key, C, num_classes):
    ks = jax.random.split(key, 6)
    scale = 0.1
    return {
        "mean": jnp.array([0.485, 0.456, 0.406], jnp.float32).reshape(C, 1),
        "std": jnp.array([0.229, 0.224, 0.225], jnp.float32).reshape(C, 1),
        "wf": scale * jax.random.normal(ks[0], (C, FEAT_DIM), jnp.float32),
        "bf": jnp.zeros((1, FEAT_DIM), jnp.float32),
        "wt1": scale * jax.random.normal(ks[1], (4, TRACK_HID), jnp.float32),
        "bt1": jnp.zeros((1, TRACK_HID), jnp.float32),
        "wt2": scale * jax.random.normal(ks[2], (TRACK_HID, TRACK_HID), jnp.float32),
        "bt2": jnp.zeros((1, TRACK_HID), jnp.float32),
        "wc1": scale * jax.random.normal(ks[3], (FEAT_DIM + TRACK_HID, CLS_HID), jnp.float32),
        "bc1": jnp.zeros((1, CLS_HID), jnp.float32),
        "wc2": scale * jax.random.normal(ks[4], (CLS_HID, num_classes), jnp.float32),
        "bc2": jnp.zeros((1, num_classes), jnp.float32),
    }


def reference_forward(x, tracking, params):
    """Pure-JAX reference of the same forward (unfused math) for validation."""
    B, T, C, H, W = x.shape
    xf = x.astype(jnp.float32) / 255.0
    xn = (xf - params["mean"].reshape(1, 1, C, 1, 1)) / params["std"].reshape(1, 1, C, 1, 1)
    gap = jnp.mean(xn.reshape(B, T, C, H * W), axis=-1)               # (B,T,C)
    feat = gap @ params["wf"] + params["bf"]                          # (B,T,368)
    h = jnp.maximum(tracking @ params["wt1"] + params["bt1"], 0.0)
    tf = h @ params["wt2"] + params["bt2"]                            # (B,T,64)
    combined = jnp.concatenate([feat, tf], axis=-1)                   # (B,T,432)
    pooled = jnp.max(combined, axis=1)                                # (B,432)
    hc = jnp.maximum(pooled @ params["wc1"] + params["bc1"], 0.0)
    return hc @ params["wc2"] + params["bc2"]


if __name__ == "__main__":
    B, T, C, H, W = 2, 4, 3, 16, 16
    NUM_CLASSES = 8

    key = jax.random.PRNGKey(0)
    kx, kt, kp = jax.random.split(key, 3)

    x = jax.random.randint(kx, (B, T, C, H, W), 0, 256, dtype=jnp.int32).astype(jnp.uint8)
    tracking = jax.random.uniform(kt, (B, T, 4), jnp.float32, 0.0, 1.0)
    params = make_params(kp, C, NUM_CLASSES)

    out = tracking_forward(x, tracking, params)
    out = jax.block_until_ready(out)

    ref = reference_forward(x, tracking.astype(jnp.float32), params)
    assert out.shape == (B, NUM_CLASSES), out.shape
    assert jnp.allclose(out, ref, rtol=1e-2, atol=1e-3), (out, ref)

    print("KERNEL_OK")
</pallas_src>

<mosaic_0001>
module attributes {stable_mosaic.version = 11 : i64} {
  func.func @_clip_rowsum_kernel(%arg0: i32, %arg1: i32, %arg2: memref<1x96x128xi8, #tpu.memory_space<vmem>>, %arg3: memref<1x96x1xf32, #tpu.memory_space<vmem>>, %arg4: memref<96x128xf32, #tpu.memory_space<vmem>>) attributes {dimension_semantics = [#tpu.dimension_semantics<parallel>, #tpu.dimension_semantics<arbitrary>], iteration_bounds = array<i64: 2, 1>, scalar_prefetch = 0 : i64, scratch_operands = 1 : i64, tpu.core_type = #tpu.core_type<tc>, window_params = [{transform_indices = @transform_0, window_bounds = array<i64: 1, 96, 128>}, {transform_indices = @transform_1, window_bounds = array<i64: 1, 96, 1>}]} {
    %c0_i32 = arith.constant 0 : i32
    %0 = arith.cmpi eq, %arg1, %c0_i32 : i32
    %1 = arith.extui %0 : i1 to i32
    %c0_i32_0 = arith.constant 0 : i32
    %2 = arith.cmpi ne, %1, %c0_i32_0 : i32
    scf.if %2 {
      %cst = arith.constant 0.000000e+00 : f32
      %15 = vector.broadcast %cst : f32 to vector<96x128xf32>
      %c0_9 = arith.constant 0 : index
      %c0_10 = arith.constant 0 : index
      %16 = vector.load %arg4[%c0_9, %c0_10] : memref<96x128xf32, #tpu.memory_space<vmem>>, vector<96x128xf32>
      tpu.vector_store %arg4[%c0_9, %c0_10], %15 {strides = array<i32>} : memref<96x128xf32, #tpu.memory_space<vmem>>, vector<96x128xf32>,
    } else {
    }
    %c0 = arith.constant 0 : index
    %c0_1 = arith.constant 0 : index
    %3 = vector.load %arg4[%c0, %c0_1] : memref<96x128xf32, #tpu.memory_space<vmem>>, vector<96x128xf32>
    %c0_i32_2 = arith.constant 0 : i32
    %c128_i32 = arith.constant 128 : i32
    %4 = arith.muli %c0_i32_2, %c128_i32 : i32
    %5 = tpu.assume_multiple %4, 128 : i32
    %c0_3 = arith.constant 0 : index
    %c0_4 = arith.constant 0 : index
    %6 = arith.index_cast %5 : i32 to index
    %7 = vector.load %arg2[%c0_3, %c0_4, %6] : memref<1x96x128xi8, #tpu.memory_space<vmem>>, vector<1x96x128xi8>
    %8 = vector.shape_cast %7 : vector<1x96x128xi8> to vector<96x128xi8>
    %9 = arith.uitofp %8 : vector<96x128xi8> to vector<96x128xf32>
    %10 = arith.addf %3, %9 : vector<96x128xf32>
    %c1_i32 = arith.constant 1 : i32
    %c0_5 = arith.constant 0 : index
    %c0_6 = arith.constant 0 : index
    %11 = vector.load %arg4[%c0_5, %c0_6] : memref<96x128xf32, #tpu.memory_space<vmem>>, vector<96x128xf32>
    tpu.vector_store %arg4[%c0_5, %c0_6], %10 {strides = array<i32>} : memref<96x128xf32, #tpu.memory_space<vmem>>, vector<96x128xf32>,
    %c0_i32_7 = arith.constant 0 : i32
    %12 = arith.cmpi eq, %arg1, %c0_i32_7 : i32
    %13 = arith.extui %12 : i1 to i32
    %c0_i32_8 = arith.constant 0 : i32
    %14 = arith.cmpi ne, %13, %c0_i32_8 : i32
    scf.if %14 {
      %c0_9 = arith.constant 0 : index
      %c0_10 = arith.constant 0 : index
      %15 = vector.load %arg4[%c0_9, %c0_10] : memref<96x128xf32, #tpu.memory_space<vmem>>, vector<96x128xf32>
      %cst = arith.constant dense<0.000000e+00> : vector<96xf32>
      %16 = vector.multi_reduction <add>, %15, %cst [1] : vector<96x128xf32> to vector<96xf32>
      %17 = vector.shape_cast %16 : vector<96xf32> to vector<96x1xf32>
      %c0_11 = arith.constant 0 : index
      %c0_12 = arith.constant 0 : index
      %c0_13 = arith.constant 0 : index
      %18 = vector.load %arg3[%c0_11, %c0_12, %c0_13] : memref<1x96x1xf32, #tpu.memory_space<vmem>>, vector<1x96x1xf32>
      %19 = vector.shape_cast %18 : vector<1x96x1xf32> to vector<96x1xf32>
      %20 = vector.shape_cast %17 : vector<96x1xf32> to vector<1x96x1xf32>
      tpu.vector_store %arg3[%c0_11, %c0_12, %c0_13], %20 {strides = array<i32>} : memref<1x96x1xf32, #tpu.memory_space<vmem>>, vector<1x96x1xf32>,
    } else {
    }
    return
  }
  func.func @transform_0(%arg0: i32, %arg1: i32) -> (i32, i32, i32) {
    %c0_i32 = arith.constant 0 : i32
    %c0_i32_0 = arith.constant 0 : i32
    return %arg0, %c0_i32, %arg1 : i32, i32, i32
  }
  func.func @transform_1(%arg0: i32, %arg1: i32) -> (i32, i32, i32) {
    %c0_i32 = arith.constant 0 : i32
    %c0_i32_0 = arith.constant 0 : i32
    %c0_i32_1 = arith.constant 0 : i32
    return %arg0, %c0_i32, %c0_i32_0 : i32, i32, i32
  }
}

</mosaic_0001>

<llo_original>
// kernel: tpu_custom_call.1
$region0: #{tpu_custom_call.1}
  #allocation0 [shape = 'u32[]', space=smem, size = 0x4, offset = 0x4, fixed_abs, tag = 'smem constant byte address 0x4 - core index']
  #allocation1 [shape = 'u32[144,128]{1,0:T(1,128)}', space=vmem, size = 0x12000, scoped, tag = 'internal scratch']
  #allocation2 [shape = 'f32[96,128]{1,0:T(8,128)}', space=vmem, size = 0xc000, scoped, tag = 'scratch operand']
  %s0 = inlined_call_operand.hbm [shape: u8[2,96,128], index: 0, kind: input, shape index: {}]
  %s1 = inlined_call_operand.vmem [shape: f32[2,96,1], index: 1, kind: output, shape index: {}]
  %s2 = sld [smem:[#allocation0]]
  $region49: #{tpu_custom_call.1} parent=0
    _
  %s4 = ssub.s32 1, %s2
  %s5 = scalar_select 0, %s4, %s2
  $region1: #{tpu_custom_call.1} parent=0
    #allocation3 [shape = 'u8[24576]{0}', space=vmem, size = 0x6000, scoped, tag = 'input window, operand 0']
    #allocation4 [shape = 's32[2]{0}', space=sflag, size = 0x8, scoped, tag = 'scoped memory for tpu_custom_call.1']
    %6 = vsyncpa [#allocation4], 0
    %s7 = scalar_lea.sflag [#allocation4], 1
    %8 = vsyncpa %s7, 0
    loop: start=0, step=1, limit=4
    $region2: #{tpu_custom_call.1} parent=1 // loop_pre_header
      _
    $region3: #{tpu_custom_call.1} parent=1 // loop_header
      %s10 = sphi 0, %s14
      %p11 = scmp.ge.s32.totalorder %s10, 4
      %s17 = sphi 0, %s29
      %s18 = sphi 0, %s25
      %s19 = sphi 0, %s17
      %s20 = sphi 0, %s18
      %s21 = sphi 0, %s19
      %s22 = sphi 0, %s20
      %s34 = sphi 0, %s36
      %s37 = sphi 0, %s34
      %s38 = sphi 0, %s37
      %s54 = sphi 0, %s38
      %s60 = sphi 0, %s62
      %s63 = sphi 0, %s60
      %s64 = sphi 0, %s63
      %s80 = sphi 0, %s64
    $region4: #{tpu_custom_call.1} parent=1 // loop_header_branch
      %13 = sbr.rel (%p11) target = $region8
    $region5: #{tpu_custom_call.1} parent=1 // loop_body
      %s15 = ssub.s32 %s10, 1
      %s16 = ssub.s32 %s10, 2
      %s23 = sadd.s32 1, %s18
      %p24 = scmp.ge.s32.totalorder %s23, 1
      %s25 = scalar_select %p24, 0, %s23
      %s26 = sadd.s32 1, %s17
      %s27 = scalar_select %p24, %s26, %s17
      %p28 = scmp.ge.s32.totalorder %s27, 2
      %s29 = scalar_select %p28, 0, %s27
      %s30 = ssub.s32 %s17, %s29
      %s31 = ssub.s32 %s18, %s25
      %s32 = sor.u32 %s30, %s31
      %p33 = scmp.eq.s32.totalorder %s32, 0
      %s35 = sadd.s32 %s34, 1
      %s36 = scalar_select %p33, %s34, %s35
      %p39 = pneg %p33
      %p40 = scmp.eq.s32.totalorder %s10, 1
      %p41 = por %p39, %p40
      %p42 = scmp.ne.s32.totalorder %s34, %s37
      %p43 = scmp.eq.s32.totalorder %s10, 0
      %p44 = por %p42, %p43
      %p45 = scmp.ne.s32.totalorder %s34, %s37
      %p46 = scmp.eq.s32.totalorder %s15, 1
      %p47 = por %p45, %p46
      %p48 = scmp.ne.s32.totalorder %s37, %s38
      %p49 = scmp.eq.s32.totalorder %s15, 0
      %p50 = por %p48, %p49
      %p51 = scmp.ne.s32.totalorder %s37, %s38
      %p52 = scmp.eq.s32.totalorder %s16, 1
      %p53 = por %p51, %p52
      %p55 = scmp.ne.s32.totalorder %s38, %s54
      %p56 = scmp.eq.s32.totalorder %s16, 0
      %p57 = por %p55, %p56
      %s58 = ssub.s32 %s17, %s29
      %p59 = scmp.eq.s32.totalorder %s58, 0
      %s61 = sadd.s32 %s60, 1
      %s62 = scalar_select %p59, %s60, %s61
      %p65 = pneg %p59
      %p66 = scmp.eq.s32.totalorder %s10, 1
      %p67 = por %p65, %p66
      %p68 = scmp.ne.s32.totalorder %s60, %s63
      %p69 = scmp.eq.s32.totalorder %s10, 0
      %p70 = por %p68, %p69
      %p71 = scmp.ne.s32.totalorder %s60, %s63
      %p72 = scmp.eq.s32.totalorder %s15, 1
      %p73 = por %p71, %p72
      %p74 = scmp.ne.s32.totalorder %s63, %s64
      %p75 = scmp.eq.s32.totalorder %s15, 0
      %p76 = por %p74, %p75
      %p77 = scmp.ne.s32.totalorder %s63, %s64
      %p78 = scmp.eq.s32.totalorder %s16, 1
      %p79 = por %p77, %p78
      %p81 = scmp.ne.s32.totalorder %s64, %s80
      %p82 = scmp.eq.s32.totalorder %s16, 0
      %p83 = por %p81, %p82
      %p84 = scmp.le.s32.totalorder 1, %s10
      %p85 = scmp.lt.s32.totalorder %s10, 3
      %p86 = pnand %p84, %p85
      %p87 = pneg %p86
      // Predicated region
      $region9: #{tpu_custom_call.1} parent=5 // pred_check
        _
      $region10: #{tpu_custom_call.1} parent=5 // pred_check_branch
        %89 = sbr.rel (%p86) target = $region12
      $region11: #{tpu_custom_call.1} parent=5 // pred_region
        %s90 = ssub.s32 %s10, 1
      $region12: #{tpu_custom_call.1} parent=5 // pred_fallthru
        _
      %p91 = scmp.lt.s32.totalorder %s10, 2
      // Predicated region
      $region13: #{tpu_custom_call.1} parent=5 // pred_check
        %p92 = pneg %p91
      $region14: #{tpu_custom_call.1} parent=5 // pred_check_branch
        %94 = sbr.rel (%p92) target = $region16
      $region15: #{tpu_custom_call.1} parent=5 // pred_region
        // Predicated region
        $region17: #{tpu_custom_call.1} parent=15 // pred_check
          %p95 = pneg %p44
        $region18: #{tpu_custom_call.1} parent=15 // pred_check_branch
          %97 = sbr.rel (%p95) target = $region20
        $region19: #{tpu_custom_call.1} parent=15 // pred_region
          %s98 = sand.u32 %s34, 1
          %s99 = scalar_lea.sflag [#allocation4], %s98
          %s100 = sand.u32 %s34, 1
          %s101 = smul.addr %s100, 24
          %s102 = scalar_lea.vmem [#allocation3], %s101
          %s104 = ssub.s32 384, 384
          %105 = vsyncadd %s99, %s104
          %s106 = smul.addr %s17, 3
          %s107 = sadd.s32 %s18, %s106
          %s108 = smul.addr %s107, 128
          %s109 = scalar_lea.hbm %s0, %s108
          %s110 = sshll.u32 %s102, 4
          %s111 = int_to_ptr.vmem [resolvable:$true] %s110
          %116 = dma.hbm_to_vmem [thread:$0]  %s109, 384, %s111, %s99, 128, 128, 8
        $region20: #{tpu_custom_call.1} parent=15 // pred_fallthru
          _
      $region16: #{tpu_custom_call.1} parent=5 // pred_fallthru
        _
      %p117 = scmp.le.s32.totalorder 1, %s10
      %p118 = scmp.lt.s32.totalorder %s10, 3
      %p119 = pnand %p117, %p118
      %p120 = pneg %p119
      // Predicated region
      $region21: #{tpu_custom_call.1} parent=5 // pred_check
        _
      $region22: #{tpu_custom_call.1} parent=5 // pred_check_branch
        %122 = sbr.rel (%p119) target = $region24
      $region23: #{tpu_custom_call.1} parent=5 // pred_region
        %s123 = ssub.s32 %s10, 1
        %s124 = sand.u32 %s37, 1
        %s125 = scalar_lea.sflag [#allocation4], %s124
        %s126 = sand.u32 %s37, 1
        %s127 = smul.addr %s126, 24
        %s128 = scalar_lea.vmem [#allocation3], %s127
        // Predicated region
        $region25: #{tpu_custom_call.1} parent=23 // pred_check
          %p129 = pneg %p50
        $region26: #{tpu_custom_call.1} parent=23 // pred_check_branch
          %131 = sbr.rel (%p129) target = $region28
        $region27: #{tpu_custom_call.1} parent=23 // pred_region
          %132 = dma.done %s125, 384
        $region28: #{tpu_custom_call.1} parent=23 // pred_fallthru
          _
        %s133 = sand.u32 %s37, 1
        %s134 = scalar_lea.sflag [#allocation4], %s133
        %s135 = sand.u32 %s37, 1
        %s136 = smul.addr %s135, 24
        %s137 = scalar_lea.vmem [#allocation3], %s136
        %p138 = pneg %p50
        %p139 = pneg %p47
        %p140 = pneg %p76
        %p141 = pneg %p73
        %p142 = scmp.lt.s32.totalorder %s19, 1
        %s143 = scalar_select %p142, %s19, 1
        %s144 = smul.addr %s143, 12
        %s145 = smul.addr %s144, 8
        %s146 = scalar_lea.vmem %s1, %s145
        %p147 = scmp.lt.s32.totalorder %s19, 1
        %s148 = scalar_select %p147, %s19, 1
        %s149 = smul.addr %s148, 12
        %s150 = smul.addr %s149, 8
        %s151 = scalar_lea.vmem %s1, %s150
        %p152 = scmp.eq.s32.totalorder %s20, 0
        // Predicated region
        $region29: #{tpu_custom_call.1} parent=23 // pred_check
          %p153 = pneg %p152
        $region30: #{tpu_custom_call.1} parent=23 // pred_check_branch
          %155 = sbr.rel (%p153) target = $region32
        $region31: #{tpu_custom_call.1} parent=23 // pred_region
          %156 = vst [vmem:[#allocation2] sm:$0xff] 0.0
          %157 = vst [vmem:[#allocation2 + $0x8] sm:$0xff] 0.0
          %158 = vst [vmem:[#allocation2 + $0x10] sm:$0xff] 0.0
          %159 = vst [vmem:[#allocation2 + $0x18] sm:$0xff] 0.0
          %160 = vst [vmem:[#allocation2 + $0x20] sm:$0xff] 0.0
          %161 = vst [vmem:[#allocation2 + $0x28] sm:$0xff] 0.0
          %162 = vst [vmem:[#allocation2 + $0x30] sm:$0xff] 0.0
          %163 = vst [vmem:[#allocation2 + $0x38] sm:$0xff] 0.0
          %164 = vst [vmem:[#allocation2 + $0x40] sm:$0xff] 0.0
          %165 = vst [vmem:[#allocation2 + $0x48] sm:$0xff] 0.0
          %166 = vst [vmem:[#allocation2 + $0x50] sm:$0xff] 0.0
          %167 = vst [vmem:[#allocation2 + $0x58] sm:$0xff] 0.0
        $region32: #{tpu_custom_call.1} parent=23 // pred_fallthru
          _
        %v168 = vld [vmem:[#allocation2] sm:$0xff]
        %v169 = vld [vmem:[#allocation2 + $0x8] sm:$0xff]
        %v170 = vld [vmem:[#allocation2 + $0x10] sm:$0xff]
        %v171 = vld [vmem:[#allocation2 + $0x18] sm:$0xff]
        %v172 = vld [vmem:[#allocation2 + $0x20] sm:$0xff]
        %v173 = vld [vmem:[#allocation2 + $0x28] sm:$0xff]
        %v174 = vld [vmem:[#allocation2 + $0x30] sm:$0xff]
        %v175 = vld [vmem:[#allocation2 + $0x38] sm:$0xff]
        %v176 = vld [vmem:[#allocation2 + $0x40] sm:$0xff]
        %v177 = vld [vmem:[#allocation2 + $0x48] sm:$0xff]
        %v178 = vld [vmem:[#allocation2 + $0x50] sm:$0xff]
        %v179 = vld [vmem:[#allocation2 + $0x58] sm:$0xff]
        %v180 = vld [vmem:[%s128] sm:$0xff]
        %v181 = vld [vmem:[%s128 + $0x8] sm:$0xff]
        %v182 = vld [vmem:[%s128 + $0x10] sm:$0xff]
        %v183 = vunpack.c.0.s8 %v180
        %v184 = vunpack.c.1.s8 %v180
        %v185 = vunpack.c.2.s8 %v180
        %v186 = vunpack.c.3.s8 %v180
        %v187 = vunpack.c.0.s8 %v181
        %v188 = vunpack.c.1.s8 %v181
        %v189 = vunpack.c.2.s8 %v181
        %v190 = vunpack.c.3.s8 %v181
        %v191 = vunpack.c.0.s8 %v182
        %v192 = vunpack.c.1.s8 %v182
        %v193 = vunpack.c.2.s8 %v182
        %v194 = vunpack.c.3.s8 %v182
        %v195 = vand.u32 %v183, 255
        %v196 = vand.u32 %v184, 255
        %v197 = vand.u32 %v185, 255
        %v198 = vand.u32 %v186, 255
        %v199 = vand.u32 %v187, 255
        %v200 = vand.u32 %v188, 255
        %v201 = vand.u32 %v189, 255
        %v202 = vand.u32 %v190, 255
        %v203 = vand.u32 %v191, 255
        %v204 = vand.u32 %v192, 255
        %v205 = vand.u32 %v193, 255
        %v206 = vand.u32 %v194, 255
        %v207 = vcvt.s32.f32 %v195
        %v208 = vcvt.s32.f32 %v196
        %v209 = vcvt.s32.f32 %v197
        %v210 = vcvt.s32.f32 %v198
        %v211 = vcvt.s32.f32 %v199
        %v212 = vcvt.s32.f32 %v200
        %v213 = vcvt.s32.f32 %v201
        %v214 = vcvt.s32.f32 %v202
        %v215 = vcvt.s32.f32 %v203
        %v216 = vcvt.s32.f32 %v204
        %v217 = vcvt.s32.f32 %v205
        %v218 = vcvt.s32.f32 %v206
        %v219 = vadd.f32 %v168, %v207
        %v220 = vadd.f32 %v169, %v208
        %v221 = vadd.f32 %v170, %v209
        %v222 = vadd.f32 %v171, %v210
        %v223 = vadd.f32 %v172, %v211
        %v224 = vadd.f32 %v173, %v212
        %v225 = vadd.f32 %v174, %v213
        %v226 = vadd.f32 %v175, %v214
        %v227 = vadd.f32 %v176, %v215
        %v228 = vadd.f32 %v177, %v216
        %v229 = vadd.f32 %v178, %v217
        %v230 = vadd.f32 %v179, %v218
        %231 = vst [vmem:[#allocation2] sm:$0xff] %v219
        %232 = vst [vmem:[#allocation2 + $0x8] sm:$0xff] %v220
        %233 = vst [vmem:[#allocation2 + $0x10] sm:$0xff] %v221
        %234 = vst [vmem:[#allocation2 + $0x18] sm:$0xff] %v222
        %235 = vst [vmem:[#allocation2 + $0x20] sm:$0xff] %v223
        %236 = vst [vmem:[#allocation2 + $0x28] sm:$0xff] %v224
        %237 = vst [vmem:[#allocation2 + $0x30] sm:$0xff] %v225
        %238 = vst [vmem:[#allocation2 + $0x38] sm:$0xff] %v226
        %239 = vst [vmem:[#allocation2 + $0x40] sm:$0xff] %v227
        %240 = vst [vmem:[#allocation2 + $0x48] sm:$0xff] %v228
        %241 = vst [vmem:[#allocation2 + $0x50] sm:$0xff] %v229
        %242 = vst [vmem:[#allocation2 + $0x58] sm:$0xff] %v230
        // Predicated region
        $region33: #{tpu_custom_call.1} parent=23 // pred_check
          %p243 = pneg %p152
        $region34: #{tpu_custom_call.1} parent=23 // pred_check_branch
          %245 = sbr.rel (%p243) target = $region36
        $region35: #{tpu_custom_call.1} parent=23 // pred_region
          %v246 = vld [vmem:[#allocation2] sm:$0xff]
          %v247 = vld [vmem:[#allocation2 + $0x8] sm:$0xff]
          %v248 = vld [vmem:[#allocation2 + $0x10] sm:$0xff]
          %v249 = vld [vmem:[#allocation2 + $0x18] sm:$0xff]
          %v250 = vld [vmem:[#allocation2 + $0x20] sm:$0xff]
          %v251 = vld [vmem:[#allocation2 + $0x28] sm:$0xff]
          %v252 = vld [vmem:[#allocation2 + $0x30] sm:$0xff]
          %v253 = vld [vmem:[#allocation2 + $0x38] sm:$0xff]
          %v254 = vld [vmem:[#allocation2 + $0x40] sm:$0xff]
          %v255 = vld [vmem:[#allocation2 + $0x48] sm:$0xff]
          %v256 = vld [vmem:[#allocation2 + $0x50] sm:$0xff]
          %v257 = vld [vmem:[#allocation2 + $0x58] sm:$0xff]
          %258 = vadd.xlane.f32.xlu0 %v246
          %v259 = vpop.xlane.xlu0 %258
          %260 = vadd.xlane.f32.xlu0 %v247
          %v261 = vpop.xlane.xlu0 %260
          %262 = vadd.xlane.f32.xlu0 %v248
          %v263 = vpop.xlane.xlu0 %262
          %264 = vadd.xlane.f32.xlu0 %v249
          %v265 = vpop.xlane.xlu0 %264
          %266 = vadd.xlane.f32.xlu0 %v250
          %v267 = vpop.xlane.xlu0 %266
          %268 = vadd.xlane.f32.xlu0 %v251
          %v269 = vpop.xlane.xlu0 %268
          %270 = vadd.xlane.f32.xlu0 %v252
          %v271 = vpop.xlane.xlu0 %270
          %272 = vadd.xlane.f32.xlu0 %v253
          %v273 = vpop.xlane.xlu0 %272
          %274 = vadd.xlane.f32.xlu0 %v254
          %v275 = vpop.xlane.xlu0 %274
          %276 = vadd.xlane.f32.xlu0 %v255
          %v277 = vpop.xlane.xlu0 %276
          %278 = vadd.xlane.f32.xlu0 %v256
          %v279 = vpop.xlane.xlu0 %278
          %280 = vadd.xlane.f32.xlu0 %v257
          %v281 = vpop.xlane.xlu0 %280
          %vm282 = vcmask 7168
          %283 = vst.msk [vmem:[%s151] sm:$0xff] %vm282, %v259
          %284 = vst.msk [vmem:[%s151 + $0x8] sm:$0xff] %vm282, %v261
          %285 = vst.msk [vmem:[%s151 + $0x10] sm:$0xff] %vm282, %v263
          %286 = vst.msk [vmem:[%s151 + $0x18] sm:$0xff] %vm282, %v265
          %287 = vst.msk [vmem:[%s151 + $0x20] sm:$0xff] %vm282, %v267
          %288 = vst.msk [vmem:[%s151 + $0x28] sm:$0xff] %vm282, %v269
          %289 = vst.msk [vmem:[%s151 + $0x30] sm:$0xff] %vm282, %v271
          %290 = vst.msk [vmem:[%s151 + $0x38] sm:$0xff] %vm282, %v273
          %291 = vst.msk [vmem:[%s151 + $0x40] sm:$0xff] %vm282, %v275
          %292 = vst.msk [vmem:[%s151 + $0x48] sm:$0xff] %vm282, %v277
          %293 = vst.msk [vmem:[%s151 + $0x50] sm:$0xff] %vm282, %v279
          %294 = vst.msk [vmem:[%s151 + $0x58] sm:$0xff] %vm282, %v281
        $region36: #{tpu_custom_call.1} parent=23 // pred_fallthru
          _
        %p295 = scmp.lt.s32.totalorder %s19, 1
        %s296 = scalar_select %p295, %s19, 1
        %s297 = smul.addr %s296, 12
        %s298 = smul.addr %s297, 8
        %s299 = scalar_lea.vmem %s1, %s298
        // Predicated region
        $region37: #{tpu_custom_call.1} parent=23 // pred_check
          %p300 = pneg %p73
        $region38: #{tpu_custom_call.1} parent=23 // pred_check_branch
          %302 = sbr.rel (%p300) target = $region40
        $region39: #{tpu_custom_call.1} parent=23 // pred_region
          _
        $region40: #{tpu_custom_call.1} parent=23 // pred_fallthru
          _
      $region24: #{tpu_custom_call.1} parent=5 // pred_fallthru
        _
      %p303 = scmp.le.s32.totalorder 2, %s10
      // Predicated region
      $region41: #{tpu_custom_call.1} parent=5 // pred_check
        %p304 = pneg %p303
      $region42: #{tpu_custom_call.1} parent=5 // pred_check_branch
        %306 = sbr.rel (%p304) target = $region44
      $region43: #{tpu_custom_call.1} parent=5 // pred_region
        %s307 = ssub.s32 %s10, 2
        // Predicated region
        $region45: #{tpu_custom_call.1} parent=43 // pred_check
          %p308 = pneg %p79
        $region46: #{tpu_custom_call.1} parent=43 // pred_check_branch
          %310 = sbr.rel (%p308) target = $region48
        $region47: #{tpu_custom_call.1} parent=43 // pred_region
          %p311 = scmp.lt.s32.totalorder %s21, 1
          %s312 = scalar_select %p311, %s21, 1
          %s313 = smul.addr %s312, 12
          %s314 = smul.addr %s313, 8
          %s315 = scalar_lea.vmem %s1, %s314
        $region48: #{tpu_custom_call.1} parent=43 // pred_fallthru
          _
      $region44: #{tpu_custom_call.1} parent=5 // pred_fallthru
        _
    $region6: #{tpu_custom_call.1} parent=1 // loop_footer
      %s14 = sadd.s32 1, %s10
    $region7: #{tpu_custom_call.1} parent=1 // loop_footer_branch
      %9 = sbr.rel target = $region3
    $region8: #{tpu_custom_call.1} parent=1 // loop_exit
      _
    %316 = vsyncpa [#allocation4], 1
    %s317 = scalar_lea.sflag [#allocation4], 1
    %318 = vsyncpa %s317, 1

</llo_original>
